<compile_context>
chip_gen: v7x
topology: tpu7x:2x2x1
jax: 0.10.0
libtpu: 0.0.40
codegen_flags: <defaults>
</compile_context>

<pallas_src>
import jax
import jax.numpy as jnp
from jax.experimental import pallas as pl
from jax.experimental.pallas import tpu as pltpu


def _windkessel_rhs_kernel(c_ref,                                   # (5,) SMEM scalars
                           P_ref, derP_ref, Qin_ref, derQin_ref,    # inputs  (tr, L)
                           Prhs_ref, Qrhs_ref):                     # outputs (tr, L)
    # Prefetched derived constants: [P_out, Z_0 + R, 1/(R*C), Z_0, 1/Z_0]
    P_out = c_ref[0]
    ZR = c_ref[1]
    inv_RC = c_ref[2]
    Z0 = c_ref[3]
    inv_Z0 = c_ref[4]

    P = P_ref[...]
    Q_in = Qin_ref[...]

    # Shared term:  t = (P_out - P + (Z_0 + R) * Q_in) / (R * C)
    t = (P_out - P + ZR * Q_in) * inv_RC

    # dP/dt    = t + Z_0 * der_Q_in
    Prhs_ref[...] = t + Z0 * derQin_ref[...]
    # dQ_in/dt = (der_P - t) / Z_0
    Qrhs_ref[...] = (derP_ref[...] - t) * inv_Z0


def windkessel_rhs(params, P, der_P, Q_in, der_Q_in, *,
                   lane_width=1024, tile_rows=512):
    """Compute (P_rhs, Q_in_rhs) with a Pallas TPU kernel.

    params: (4,) float32 array [R, Z_0, C, P_out] (the module's Parameters).
    P, der_P, Q_in, der_Q_in: float32 arrays of identical (arbitrary) shape.
    Returns arrays with the same shape as the inputs.
    """
    assert lane_width % 128 == 0 and tile_rows % 8 == 0
    orig_shape = P.shape
    dtype = P.dtype
    total = P.size

    # Derived scalars computed once in the wrapper (no per-element divides).
    R, Z0, C, P_out = params[0], params[1], params[2], params[3]
    consts = jnp.stack(
        [P_out, Z0 + R, 1.0 / (R * C), Z0, 1.0 / Z0]).astype(jnp.float32)

    # ---- choose a lane-dense (rows, L) slab layout -------------------------
    L = lane_width if total >= lane_width else 128
    rows_needed = -(-total // L)                       # ceil-div
    if rows_needed >= tile_rows:
        tr = tile_rows
        rows = -(-rows_needed // tr) * tr              # pad rows to tile multiple
    else:
        # Small input: a single full-array block (allowed regardless of (8,128)).
        tr = rows = rows_needed
    padded_total = rows * L

    def to_slab(x):
        flat = x.reshape(-1)
        if padded_total != total:
            flat = jnp.pad(flat, (0, padded_total - total))
        return flat.reshape(rows, L)

    slabs = [to_slab(x) for x in (P, der_P, Q_in, der_Q_in)]

    tile = pl.BlockSpec((tr, L), lambda i, c: (i, 0))

    grid_spec = pltpu.PrefetchScalarGridSpec(
        num_scalar_prefetch=1,
        grid=(rows // tr,),
        in_specs=[tile, tile, tile, tile],
        out_specs=[tile, tile],
    )

    out_shape = (
        jax.ShapeDtypeStruct((rows, L), dtype),
        jax.ShapeDtypeStruct((rows, L), dtype),
    )

    P_rhs_slab, Q_rhs_slab = pl.pallas_call(
        _windkessel_rhs_kernel,
        out_shape=out_shape,
        grid_spec=grid_spec,
        compiler_params=pltpu.CompilerParams(
            dimension_semantics=("parallel",),
            # 6 streams x 2 buffers x (tr*L*4B) ~= 24 MiB at defaults; leave
            # headroom but stay under v7x's 64 MiB physical VMEM.
            vmem_limit_bytes=48 * 1024 * 1024,
        ),
    )(consts, *slabs)

    def from_slab(y):
        return y.reshape(-1)[:total].reshape(orig_shape)

    return from_slab(P_rhs_slab), from_slab(Q_rhs_slab)


def _reference_rhs(params, P, der_P, Q_in, der_Q_in):
    R, Z0, C, P_out = params
    P_rhs = (P_out - P + (Z0 + R) * Q_in) / (R * C) + Z0 * der_Q_in
    Q_rhs = (der_P + (P - P_out - (Z0 + R) * Q_in) / (R * C)) / Z0
    return P_rhs, Q_rhs


def _run_case(params, key, shape):
    k1, k2, k3, k4 = jax.random.split(key, 4)
    P = 80.0 + 20.0 * jax.random.uniform(k1, shape, dtype=jnp.float32)
    der_P = jax.random.normal(k2, shape, dtype=jnp.float32)
    Q_in = 5.0 * jax.random.uniform(k3, shape, dtype=jnp.float32)
    der_Q_in = jax.random.normal(k4, shape, dtype=jnp.float32)

    P_rhs, Q_rhs = windkessel_rhs(params, P, der_P, Q_in, der_Q_in)
    jax.block_until_ready((P_rhs, Q_rhs))

    P_rhs_ref, Q_rhs_ref = _reference_rhs(params, P, der_P, Q_in, der_Q_in)
    assert P_rhs.shape == shape and Q_rhs.shape == shape
    assert jnp.allclose(P_rhs, P_rhs_ref, rtol=1e-5, atol=1e-5)
    assert jnp.allclose(Q_rhs, Q_rhs_ref, rtol=1e-4, atol=1e-4)


if __name__ == "__main__":
    # Deterministic parameter init, mirroring WindkesselTorchModel.__init__:
    #   R = 0.5, Z_0 = 0.0485, C = 2.27, P_out = 33.2  (each a (1,) Parameter).
    params = jnp.array([0.5, 0.0485, 2.27, 33.2], dtype=jnp.float32)

    key = jax.random.PRNGKey(0)
    k_small, k_ragged, k_tiled = jax.random.split(key, 3)

    # Small batch of state samples (single full-array block path).
    _run_case(params, k_small, (16, 128))
    # Ragged shape -> exercises flatten + pad + un-pad path.
    _run_case(params, k_ragged, (37, 53))
    # Modest batch -> exercises the large lane-dense tiles + multi-step grid.
    _run_case(params, k_tiled, (1024, 640))

    print("KERNEL_OK")
</pallas_src>

<mosaic_0001>
module attributes {stable_mosaic.version = 11 : i64} {
  func.func @_windkessel_rhs_kernel(%arg0: i32, %arg1: memref<5xf32, #tpu.memory_space<smem>>, %arg2: memref<2x1024xf32, #tpu.memory_space<vmem>>, %arg3: memref<2x1024xf32, #tpu.memory_space<vmem>>, %arg4: memref<2x1024xf32, #tpu.memory_space<vmem>>, %arg5: memref<2x1024xf32, #tpu.memory_space<vmem>>, %arg6: memref<2x1024xf32, #tpu.memory_space<vmem>>, %arg7: memref<2x1024xf32, #tpu.memory_space<vmem>>) attributes {dimension_semantics = [#tpu.dimension_semantics<parallel>], iteration_bounds = array<i64: 1>, scalar_prefetch = 1 : i64, scratch_operands = 0 : i64, tpu.core_type = #tpu.core_type<tc>, window_params = [{transform_indices = @transform_0, window_bounds = array<i64: 2, 1024>}, {transform_indices = @transform_1, window_bounds = array<i64: 2, 1024>}, {transform_indices = @transform_2, window_bounds = array<i64: 2, 1024>}, {transform_indices = @transform_3, window_bounds = array<i64: 2, 1024>}, {transform_indices = @transform_4, window_bounds = array<i64: 2, 1024>}, {transform_indices = @transform_5, window_bounds = array<i64: 2, 1024>}]} {
    %c0 = arith.constant 0 : index
    %0 = memref.load %arg1[%c0] : memref<5xf32, #tpu.memory_space<smem>>
    %c1 = arith.constant 1 : index
    %1 = memref.load %arg1[%c1] : memref<5xf32, #tpu.memory_space<smem>>
    %c2 = arith.constant 2 : index
    %2 = memref.load %arg1[%c2] : memref<5xf32, #tpu.memory_space<smem>>
    %c3 = arith.constant 3 : index
    %3 = memref.load %arg1[%c3] : memref<5xf32, #tpu.memory_space<smem>>
    %c4 = arith.constant 4 : index
    %4 = memref.load %arg1[%c4] : memref<5xf32, #tpu.memory_space<smem>>
    %c0_0 = arith.constant 0 : index
    %c0_1 = arith.constant 0 : index
    %5 = vector.load %arg2[%c0_0, %c0_1] : memref<2x1024xf32, #tpu.memory_space<vmem>>, vector<2x1024xf32>
    %c0_2 = arith.constant 0 : index
    %c0_3 = arith.constant 0 : index
    %6 = vector.load %arg4[%c0_2, %c0_3] : memref<2x1024xf32, #tpu.memory_space<vmem>>, vector<2x1024xf32>
    %7 = vector.broadcast %0 : f32 to vector<2x1024xf32>
    %8 = arith.subf %7, %5 : vector<2x1024xf32>
    %9 = vector.broadcast %1 : f32 to vector<2x1024xf32>
    %10 = arith.mulf %9, %6 : vector<2x1024xf32>
    %11 = arith.addf %8, %10 : vector<2x1024xf32>
    %12 = vector.broadcast %2 : f32 to vector<2x1024xf32>
    %13 = arith.mulf %11, %12 : vector<2x1024xf32>
    %c0_4 = arith.constant 0 : index
    %c0_5 = arith.constant 0 : index
    %14 = vector.load %arg5[%c0_4, %c0_5] : memref<2x1024xf32, #tpu.memory_space<vmem>>, vector<2x1024xf32>
    %15 = vector.broadcast %3 : f32 to vector<2x1024xf32>
    %16 = arith.mulf %15, %14 : vector<2x1024xf32>
    %17 = arith.addf %13, %16 : vector<2x1024xf32>
    %c0_6 = arith.constant 0 : index
    %c0_7 = arith.constant 0 : index
    %18 = vector.load %arg6[%c0_6, %c0_7] : memref<2x1024xf32, #tpu.memory_space<vmem>>, vector<2x1024xf32>
    tpu.vector_store %arg6[%c0_6, %c0_7], %17 {strides = array<i32>} : memref<2x1024xf32, #tpu.memory_space<vmem>>, vector<2x1024xf32>,
    %c0_8 = arith.constant 0 : index
    %c0_9 = arith.constant 0 : index
    %19 = vector.load %arg3[%c0_8, %c0_9] : memref<2x1024xf32, #tpu.memory_space<vmem>>, vector<2x1024xf32>
    %20 = arith.subf %19, %13 : vector<2x1024xf32>
    %21 = vector.broadcast %4 : f32 to vector<2x1024xf32>
    %22 = arith.mulf %20, %21 : vector<2x1024xf32>
    %c0_10 = arith.constant 0 : index
    %c0_11 = arith.constant 0 : index
    %23 = vector.load %arg7[%c0_10, %c0_11] : memref<2x1024xf32, #tpu.memory_space<vmem>>, vector<2x1024xf32>
    tpu.vector_store %arg7[%c0_10, %c0_11], %22 {strides = array<i32>} : memref<2x1024xf32, #tpu.memory_space<vmem>>, vector<2x1024xf32>,
    return
  }
  func.func @transform_0(%arg0: i32, %arg1: memref<5xf32, #tpu.memory_space<smem>>) -> (i32, i32) {
    %c0_i32 = arith.constant 0 : i32
    %c0_i32_0 = arith.constant 0 : i32
    return %arg0, %c0_i32 : i32, i32
  }
  func.func @transform_1(%arg0: i32, %arg1: memref<5xf32, #tpu.memory_space<smem>>) -> (i32, i32) {
    %c0_i32 = arith.constant 0 : i32
    %c0_i32_0 = arith.constant 0 : i32
    return %arg0, %c0_i32 : i32, i32
  }
  func.func @transform_2(%arg0: i32, %arg1: memref<5xf32, #tpu.memory_space<smem>>) -> (i32, i32) {
    %c0_i32 = arith.constant 0 : i32
    %c0_i32_0 = arith.constant 0 : i32
    return %arg0, %c0_i32 : i32, i32
  }
  func.func @transform_3(%arg0: i32, %arg1: memref<5xf32, #tpu.memory_space<smem>>) -> (i32, i32) {
    %c0_i32 = arith.constant 0 : i32
    %c0_i32_0 = arith.constant 0 : i32
    return %arg0, %c0_i32 : i32, i32
  }
  func.func @transform_4(%arg0: i32, %arg1: memref<5xf32, #tpu.memory_space<smem>>) -> (i32, i32) {
    %c0_i32 = arith.constant 0 : i32
    %c0_i32_0 = arith.constant 0 : i32
    return %arg0, %c0_i32 : i32, i32
  }
  func.func @transform_5(%arg0: i32, %arg1: memref<5xf32, #tpu.memory_space<smem>>) -> (i32, i32) {
    %c0_i32 = arith.constant 0 : i32
    %c0_i32_0 = arith.constant 0 : i32
    return %arg0, %c0_i32 : i32, i32
  }
}

</mosaic_0001>

<llo_original>
// kernel: tpu_custom_call.1
$region0: #{tpu_custom_call.1}
  #allocation0 [shape = 'u32[]', space=smem, size = 0x4, offset = 0x4, fixed_abs, tag = 'smem constant byte address 0x4 - core index']
  #allocation1 [shape = 'u32[144,128]{1,0:T(1,128)}', space=vmem, size = 0x12000, scoped, tag = 'internal scratch']
  #allocation2 [shape = 's32[1]{0}', space=sflag, size = 0x4, scoped, tag = 'scoped memory for tpu_custom_call.1']
  #allocation3 [shape = 'u8[512]{0}', space=smem, size = 0x200, scoped, tag = 'prefetched SMEM operand 0']
  %s0 = inlined_call_operand.hbm [shape: f32[5], index: 0, kind: input, shape index: {}]
  %s1 = inlined_call_operand.hbm [shape: f32[2,1024], index: 1, kind: input, shape index: {}]
  %s2 = inlined_call_operand.hbm [shape: f32[2,1024], index: 2, kind: input, shape index: {}]
  %s3 = inlined_call_operand.hbm [shape: f32[2,1024], index: 3, kind: input, shape index: {}]
  %s4 = inlined_call_operand.hbm [shape: f32[2,1024], index: 4, kind: input, shape index: {}]
  %s5 = inlined_call_operand.hbm [shape: f32[2,1024], index: 5, kind: output, shape index: {0}]
  %s6 = inlined_call_operand.hbm [shape: f32[2,1024], index: 6, kind: output, shape index: {1}]
  %7 = xla_tuple %s5, %s6
  %s8 = sld [smem:[#allocation0]]
  $region50: #{tpu_custom_call.1} parent=0
    _
  %s10 = ssub.s32 1, %s8
  %s11 = scalar_select 0, %s10, %s8
  %13 = dma.hbm_to_smem %s0, 16, [#allocation3], [#allocation2]
  %14 = dma.done [#allocation2], 16
  %15 = sfence
  $region1: #{tpu_custom_call.1} parent=0
    #allocation4 [shape = 'u8[8192]{0}', space=vmem, size = 0x2000, scoped, tag = 'input window, operand 1, single buffered']
    #allocation5 [shape = 's32[1]{0}', space=sflag, size = 0x4, scoped, tag = 'scoped memory for tpu_custom_call.1']
    #allocation6 [shape = 's32[1]{0}', space=sflag, size = 0x4, scoped, tag = 'scoped memory for tpu_custom_call.1']
    #allocation7 [shape = 'u8[8192]{0}', space=vmem, size = 0x2000, scoped, tag = 'input window, operand 2, single buffered']
    #allocation8 [shape = 's32[1]{0}', space=sflag, size = 0x4, scoped, tag = 'scoped memory for tpu_custom_call.1']
    #allocation9 [shape = 'u8[8192]{0}', space=vmem, size = 0x2000, scoped, tag = 'input window, operand 3, single buffered']
    #allocation10 [shape = 'u8[8192]{0}', space=vmem, size = 0x2000, scoped, tag = 'input window, operand 4, single buffered']
    #allocation11 [shape = 's32[1]{0}', space=sflag, size = 0x4, scoped, tag = 'scoped memory for tpu_custom_call.1']
    #allocation12 [shape = 'u8[8192]{0}', space=vmem, size = 0x2000, scoped, tag = 'output window, operand 0, single buffered']
    #allocation13 [shape = 'u8[8192]{0}', space=vmem, size = 0x2000, scoped, tag = 'output window, operand 1, single buffered']
    #allocation14 [shape = 's32[1]{0}', space=sflag, size = 0x4, scoped, tag = 'scoped memory for tpu_custom_call.1']
    %16 = vsyncpa [#allocation5], 0
    %17 = vsyncpa [#allocation8], 0
    %18 = vsyncpa [#allocation11], 0
    %19 = vsyncpa [#allocation6], 0
    %20 = vsyncpa [#allocation14], 0
    // Predicated region
    $region2: #{tpu_custom_call.1} parent=1 // pred_check
      _
    $region3: #{tpu_custom_call.1} parent=1 // pred_check_branch
      %22 = sbr.rel (0) target = $region5
    $region4: #{tpu_custom_call.1} parent=1 // pred_region
      %s24 = ssub.s32 256, 256
      %25 = vsyncadd [#allocation5], %s24
      %s27 = sshll.u32 [#allocation4], 4
      %s28 = int_to_ptr.vmem [resolvable:$true] %s27
      %30 = dma.hbm_to_vmem [thread:$0]  %s1, 256, %s28, [#allocation5]
    $region5: #{tpu_custom_call.1} parent=1 // pred_fallthru
      _
    // Predicated region
    $region6: #{tpu_custom_call.1} parent=1 // pred_check
      _
    $region7: #{tpu_custom_call.1} parent=1 // pred_check_branch
      %32 = sbr.rel (0) target = $region9
    $region8: #{tpu_custom_call.1} parent=1 // pred_region
      %s34 = ssub.s32 256, 256
      %35 = vsyncadd [#allocation8], %s34
      %s37 = sshll.u32 [#allocation7], 4
      %s38 = int_to_ptr.vmem [resolvable:$true] %s37
      %40 = dma.hbm_to_vmem [thread:$0]  %s2, 256, %s38, [#allocation8]
    $region9: #{tpu_custom_call.1} parent=1 // pred_fallthru
      _
    // Predicated region
    $region10: #{tpu_custom_call.1} parent=1 // pred_check
      _
    $region11: #{tpu_custom_call.1} parent=1 // pred_check_branch
      %42 = sbr.rel (0) target = $region13
    $region12: #{tpu_custom_call.1} parent=1 // pred_region
      %s44 = ssub.s32 256, 256
      %45 = vsyncadd [#allocation8], %s44
      %s47 = sshll.u32 [#allocation9], 4
      %s48 = int_to_ptr.vmem [resolvable:$true] %s47
      %50 = dma.hbm_to_vmem [thread:$0]  %s3, 256, %s48, [#allocation8]
    $region13: #{tpu_custom_call.1} parent=1 // pred_fallthru
      _
    // Predicated region
    $region14: #{tpu_custom_call.1} parent=1 // pred_check
      _
    $region15: #{tpu_custom_call.1} parent=1 // pred_check_branch
      %52 = sbr.rel (0) target = $region17
    $region16: #{tpu_custom_call.1} parent=1 // pred_region
      %s54 = ssub.s32 256, 256
      %55 = vsyncadd [#allocation11], %s54
      %s57 = sshll.u32 [#allocation10], 4
      %s58 = int_to_ptr.vmem [resolvable:$true] %s57
      %60 = dma.hbm_to_vmem [thread:$0]  %s4, 256, %s58, [#allocation11]
    $region17: #{tpu_custom_call.1} parent=1 // pred_fallthru
      _
    // Predicated region
    $region18: #{tpu_custom_call.1} parent=1 // pred_check
      _
    $region19: #{tpu_custom_call.1} parent=1 // pred_check_branch
      %62 = sbr.rel (0) target = $region21
    $region20: #{tpu_custom_call.1} parent=1 // pred_region
      %63 = dma.done [#allocation5], 256
    $region21: #{tpu_custom_call.1} parent=1 // pred_fallthru
      _
    // Predicated region
    $region22: #{tpu_custom_call.1} parent=1 // pred_check
      _
    $region23: #{tpu_custom_call.1} parent=1 // pred_check_branch
      %65 = sbr.rel (0) target = $region25
    $region24: #{tpu_custom_call.1} parent=1 // pred_region
      %66 = dma.done [#allocation8], 256
    $region25: #{tpu_custom_call.1} parent=1 // pred_fallthru
      _
    // Predicated region
    $region26: #{tpu_custom_call.1} parent=1 // pred_check
      _
    $region27: #{tpu_custom_call.1} parent=1 // pred_check_branch
      %68 = sbr.rel (0) target = $region29
    $region28: #{tpu_custom_call.1} parent=1 // pred_region
      %69 = dma.done [#allocation8], 256
    $region29: #{tpu_custom_call.1} parent=1 // pred_fallthru
      _
    // Predicated region
    $region30: #{tpu_custom_call.1} parent=1 // pred_check
      _
    $region31: #{tpu_custom_call.1} parent=1 // pred_check_branch
      %71 = sbr.rel (0) target = $region33
    $region32: #{tpu_custom_call.1} parent=1 // pred_region
      %72 = dma.done [#allocation11], 256
    $region33: #{tpu_custom_call.1} parent=1 // pred_fallthru
      _
    %s73 = sld [smem:[#allocation3]]
    %s74 = sld [smem:[#allocation3 + $0x1]]
    %s75 = sld [smem:[#allocation3 + $0x2]]
    %s76 = sld [smem:[#allocation3 + $0x3]]
    %s77 = sld [smem:[#allocation3 + $0x4]]
    %v78 = vld [vmem:[#allocation4] sm:$0xff]
    %v79 = vld [vmem:[#allocation4 + $0x8] sm:$0xff]
    %v80 = vld [vmem:[#allocation9] sm:$0xff]
    %v81 = vld [vmem:[#allocation9 + $0x8] sm:$0xff]
    %v82 = vstv %s73
    %v83 = vsub.f32 %v82, %v78
    %v84 = vsub.f32 %v82, %v79
    %v85 = vstv %s74
    %v86 = vmul.f32 %v85, %v80
    %v87 = vmul.f32 %v85, %v81
    %v88 = vadd.f32 %v83, %v86
    %v89 = vadd.f32 %v84, %v87
    %v90 = vstv %s75
    %v91 = vmul.f32 %v88, %v90
    %v92 = vmul.f32 %v89, %v90
    %v93 = vld [vmem:[#allocation10] sm:$0xff]
    %v94 = vld [vmem:[#allocation10 + $0x8] sm:$0xff]
    %v95 = vstv %s76
    %v96 = vmul.f32 %v95, %v93
    %v97 = vmul.f32 %v95, %v94
    %v98 = vadd.f32 %v91, %v96
    %v99 = vadd.f32 %v92, %v97
    %100 = vst [vmem:[#allocation12] sm:$0xff] %v98
    %101 = vst [vmem:[#allocation12 + $0x8] sm:$0xff] %v99
    %v102 = vld [vmem:[#allocation7] sm:$0xff]
    %v103 = vld [vmem:[#allocation7 + $0x8] sm:$0xff]
    %v104 = vsub.f32 %v102, %v91
    %v105 = vsub.f32 %v103, %v92
    %v106 = vstv %s77
    %v107 = vmul.f32 %v104, %v106
    %v108 = vmul.f32 %v105, %v106
    %109 = vst [vmem:[#allocation13] sm:$0xff] %v107
    %110 = vst [vmem:[#allocation13 + $0x8] sm:$0xff] %v108
    // Predicated region
    $region34: #{tpu_custom_call.1} parent=1 // pred_check
      _
    $region35: #{tpu_custom_call.1} parent=1 // pred_check_branch
      %112 = sbr.rel (0) target = $region37
    $region36: #{tpu_custom_call.1} parent=1 // pred_region
      %s114 = ssub.s32 256, 256
      %115 = vsyncadd [#allocation6], %s114
      %s117 = sshll.u32 [#allocation12], 4
      %s118 = int_to_ptr.vmem [resolvable:$true] %s117
      %120 = dma.vmem_to_hbm [thread:$0]  %s118, 256, %s5, [#allocation6]
    $region37: #{tpu_custom_call.1} parent=1 // pred_fallthru
      _
    // Predicated region
    $region38: #{tpu_custom_call.1} parent=1 // pred_check
      _
    $region39: #{tpu_custom_call.1} parent=1 // pred_check_branch
      %122 = sbr.rel (0) target = $region41
    $region40: #{tpu_custom_call.1} parent=1 // pred_region
      %s124 = ssub.s32 256, 256
      %125 = vsyncadd [#allocation14], %s124
      %s127 = sshll.u32 [#allocation13], 4
      %s128 = int_to_ptr.vmem [resolvable:$true] %s127
      %130 = dma.vmem_to_hbm [thread:$0]  %s128, 256, %s6, [#allocation14]
    $region41: #{tpu_custom_call.1} parent=1 // pred_fallthru
      _
    // Predicated region
    $region42: #{tpu_custom_call.1} parent=1 // pred_check
      _
    $region43: #{tpu_custom_call.1} parent=1 // pred_check_branch
      %132 = sbr.rel (0) target = $region45
    $region44: #{tpu_custom_call.1} parent=1 // pred_region
      %133 = dma.done [#allocation6], 256
    $region45: #{tpu_custom_call.1} parent=1 // pred_fallthru
      _
    // Predicated region
    $region46: #{tpu_custom_call.1} parent=1 // pred_check
      _
    $region47: #{tpu_custom_call.1} parent=1 // pred_check_branch
      %135 = sbr.rel (0) target = $region49
    $region48: #{tpu_custom_call.1} parent=1 // pred_region
      %136 = dma.done [#allocation14], 256
    $region49: #{tpu_custom_call.1} parent=1 // pred_fallthru
      _
    %137 = vsyncpa [#allocation5], 1
    %138 = vsyncpa [#allocation8], 1
    %139 = vsyncpa [#allocation11], 1
    %140 = vsyncpa [#allocation6], 1
    %141 = vsyncpa [#allocation14], 1

</llo_original>
